<compile_context>
chip_gen: v6e
topology: v6e:2x2x1
jax: 0.10.0
libtpu: 0.0.40
codegen_flags: <defaults>
</compile_context>

<pallas_src>
import jax
import jax.numpy as jnp
from jax import lax
from jax.experimental import pallas as pl
from jax.experimental.pallas import tpu as pltpu


def _matmul_bias_kernel(x_ref, w_ref, b_ref, o_ref):
    # x_ref: (tm, K)  w_ref: (tn, K)  b_ref: (1, tn)  o_ref: (tm, tn)
    acc = lax.dot_general(
        x_ref[...], w_ref[...],
        dimension_numbers=(((1,), (1,)), ((), ())),   # contract both last dims
        preferred_element_type=jnp.float32,
    )
    o_ref[...] = (acc + b_ref[...].astype(jnp.float32)).astype(o_ref.dtype)


def _matmul_bias_acc_kernel(x_ref, w_ref, b_ref, o_ref, acc_ref):
    # Same as above but with d_model split across the innermost grid axis.
    k = pl.program_id(2)

    @pl.when(k == 0)
    def _():
        acc_ref[...] = jnp.zeros_like(acc_ref)

    acc_ref[...] += lax.dot_general(
        x_ref[...], w_ref[...],
        dimension_numbers=(((1,), (1,)), ((), ())),
        preferred_element_type=jnp.float32,
    )

    @pl.when(k == pl.num_programs(2) - 1)
    def _():
        o_ref[...] = (acc_ref[...] + b_ref[...].astype(jnp.float32)).astype(o_ref.dtype)


def _round_up(x, m):
    return ((x + m - 1) // m) * m


def _pad_axis(a, axis, target):
    pad = target - a.shape[axis]
    if pad == 0:
        return a
    widths = [(0, 0)] * a.ndim
    widths[axis] = (0, pad)
    return jnp.pad(a, widths)


def mlm_head(x, weight, bias, *, tm=None, tn=None, tk=None,
             compute_dtype=None, vmem_limit_bytes=None):
    """MLMHead forward: y = x @ weight.T + bias.

    x: (B, S, d_model); weight: (vocab, d_model); bias: (vocab,).
    compute_dtype: optional dtype (e.g. jnp.bfloat16) for the matmul operands;
      accumulation stays float32 and the output keeps x.dtype.
    """
    B, S, K = x.shape
    N, Kw = weight.shape
    assert Kw == K and bias.shape == (N,)
    M = B * S
    out_dtype = x.dtype

    cdt = x.dtype if compute_dtype is None else compute_dtype

    # Tile defaults: MXU/lane friendly, sized so double-buffered tiles fit the
    # default scoped-VMEM budget on v5e/v6e and v7x's 64 MiB VMEM.
    if tm is None:
        tm = min(256, M)
    if tn is None:
        tn = min(2048 if cdt == jnp.bfloat16 else 1024, N)
    if tk is None:
        tk = K                       # full contraction per tile (common case)
    tk = min(tk, K)

    # Pad to tile multiples (no-op when shapes already divide evenly).
    Mp, Np, Kp = _round_up(M, tm), _round_up(N, tn), _round_up(K, tk)

    x2 = x.reshape(M, K).astype(cdt)     # flatten batch/seq; optional bf16 cast
    w2 = weight.astype(cdt)              # NOT transposed: (vocab, d_model)
    b2 = bias.astype(jnp.float32).reshape(1, N)

    x2 = _pad_axis(_pad_axis(x2, 0, Mp), 1, Kp)
    w2 = _pad_axis(_pad_axis(w2, 0, Np), 1, Kp)
    b2 = _pad_axis(b2, 1, Np)

    n_t, m_t, k_t = pl.cdiv(Np, tn), pl.cdiv(Mp, tm), pl.cdiv(Kp, tk)

    if k_t == 1:
        kernel = _matmul_bias_kernel
        scratch = []
    else:
        kernel = _matmul_bias_acc_kernel
        scratch = [pltpu.VMEM((tm, tn), jnp.float32)]

    out = pl.pallas_call(
        kernel,
        out_shape=jax.ShapeDtypeStruct((Mp, Np), out_dtype),
        grid_spec=pltpu.PrefetchScalarGridSpec(
            num_scalar_prefetch=0,
            # vocab (j) outermost, M (i) inside it, K (k) innermost reduction.
            grid=(n_t, m_t, k_t),
            in_specs=[
                pl.BlockSpec((tm, tk), lambda j, i, k: (i, k)),   # x tile
                pl.BlockSpec((tn, tk), lambda j, i, k: (j, k)),   # W tile (untransposed)
                pl.BlockSpec((1, tn), lambda j, i, k: (0, j)),    # bias tile
            ],
            out_specs=pl.BlockSpec((tm, tn), lambda j, i, k: (i, j)),
            scratch_shapes=scratch,
        ),
        compiler_params=pltpu.CompilerParams(
            dimension_semantics=("parallel", "parallel", "arbitrary"),
            vmem_limit_bytes=vmem_limit_bytes,
        ),
    )(x2, w2, b2)

    return out[:M, :N].reshape(B, S, N)


if __name__ == "__main__":
    key = jax.random.PRNGKey(0)
    kx, kw, kb = jax.random.split(key, 3)

    # --- Test 1: small shapes consistent with the module, f32 path -----------
    batch, seq, d_model, vocab_size = 2, 8, 32, 64
    x = jax.random.normal(kx, (batch, seq, d_model), dtype=jnp.float32)
    bound = 1.0 / (d_model ** 0.5)
    weight = jax.random.uniform(kw, (vocab_size, d_model), minval=-bound,
                                maxval=bound, dtype=jnp.float32)
    bias = jax.random.uniform(kb, (vocab_size,), minval=-bound, maxval=bound,
                              dtype=jnp.float32)

    y = jax.block_until_ready(mlm_head(x, weight, bias))
    y_ref = jnp.einsum("bsd,vd->bsv", x, weight,
                       precision=lax.Precision.HIGHEST) + bias
    assert y.shape == (batch, seq, vocab_size)
    assert jnp.allclose(y, y_ref, atol=1e-4, rtol=1e-4)

    # --- Test 2: exercise tiling, M-padding, K accumulation, bf16 compute ----
    b2_, s2_, d2_, v2_ = 2, 20, 256, 384          # M=40 (padded to 48), k_t=2
    kx2, kw2, kb2 = jax.random.split(jax.random.PRNGKey(1), 3)
    x2 = jax.random.normal(kx2, (b2_, s2_, d2_), dtype=jnp.float32)
    bnd2 = 1.0 / (d2_ ** 0.5)
    w2 = jax.random.uniform(kw2, (v2_, d2_), minval=-bnd2, maxval=bnd2,
                            dtype=jnp.float32)
    bi2 = jax.random.uniform(kb2, (v2_,), minval=-bnd2, maxval=bnd2,
                             dtype=jnp.float32)

    y2 = jax.block_until_ready(
        mlm_head(x2, w2, bi2, tm=16, tn=128, tk=128,
                 compute_dtype=jnp.bfloat16))
    xb = x2.astype(jnp.bfloat16).astype(jnp.float32)
    wb = w2.astype(jnp.bfloat16).astype(jnp.float32)
    y2_ref = jnp.einsum("bsd,vd->bsv", xb, wb,
                        precision=lax.Precision.HIGHEST) + bi2
    assert y2.shape == (b2_, s2_, v2_)
    assert jnp.allclose(y2, y2_ref, atol=1e-3, rtol=1e-3)

    print("KERNEL_OK")
</pallas_src>

<mosaic_0001>
module attributes {stable_mosaic.version = 11 : i64} {
  func.func @_matmul_bias_kernel(%arg0: i32, %arg1: i32, %arg2: i32, %arg3: memref<16x32xf32, #tpu.memory_space<vmem>>, %arg4: memref<64x32xf32, #tpu.memory_space<vmem>>, %arg5: memref<1x64xf32, #tpu.memory_space<vmem>>, %arg6: memref<16x64xf32, #tpu.memory_space<vmem>>) attributes {dimension_semantics = [#tpu.dimension_semantics<parallel>, #tpu.dimension_semantics<parallel>, #tpu.dimension_semantics<arbitrary>], iteration_bounds = array<i64: 1, 1, 1>, scalar_prefetch = 0 : i64, scratch_operands = 0 : i64, tpu.core_type = #tpu.core_type<tc>, window_params = [{transform_indices = @transform_0, window_bounds = array<i64: 16, 32>}, {transform_indices = @transform_1, window_bounds = array<i64: 64, 32>}, {transform_indices = @transform_2, window_bounds = array<i64: 1, 64>}, {transform_indices = @transform_3, window_bounds = array<i64: 16, 64>}]} {
    %c0 = arith.constant 0 : index
    %c0_0 = arith.constant 0 : index
    %0 = vector.load %arg3[%c0, %c0_0] : memref<16x32xf32, #tpu.memory_space<vmem>>, vector<16x32xf32>
    %c0_1 = arith.constant 0 : index
    %c0_2 = arith.constant 0 : index
    %1 = vector.load %arg4[%c0_1, %c0_2] : memref<64x32xf32, #tpu.memory_space<vmem>>, vector<64x32xf32>
    %cst = arith.constant dense<0.000000e+00> : vector<16x64xf32>
    %2 = tpu.matmul %0, %1, %cst {dimension_numbers = #tpu.dot_dimension_numbers<[1], [1], [0], [0], [0, 0, 1, 0], [], []>} : vector<16x32xf32>, vector<64x32xf32>, vector<16x64xf32> -> vector<16x64xf32>
    %c0_3 = arith.constant 0 : index
    %c0_4 = arith.constant 0 : index
    %3 = vector.load %arg5[%c0_3, %c0_4] : memref<1x64xf32, #tpu.memory_space<vmem>>, vector<1x64xf32>
    %4 = vector.broadcast %3 : vector<1x64xf32> to vector<16x64xf32>
    %5 = arith.addf %2, %4 : vector<16x64xf32>
    %c0_5 = arith.constant 0 : index
    %c0_6 = arith.constant 0 : index
    %6 = vector.load %arg6[%c0_5, %c0_6] : memref<16x64xf32, #tpu.memory_space<vmem>>, vector<16x64xf32>
    tpu.vector_store %arg6[%c0_5, %c0_6], %5 {strides = array<i32>} : memref<16x64xf32, #tpu.memory_space<vmem>>, vector<16x64xf32>,
    return
  }
  func.func @transform_0(%arg0: i32, %arg1: i32, %arg2: i32) -> (i32, i32) {
    %c0_i32 = arith.constant 0 : i32
    return %arg1, %arg2 : i32, i32
  }
  func.func @transform_1(%arg0: i32, %arg1: i32, %arg2: i32) -> (i32, i32) {
    %c0_i32 = arith.constant 0 : i32
    return %arg0, %arg2 : i32, i32
  }
  func.func @transform_2(%arg0: i32, %arg1: i32, %arg2: i32) -> (i32, i32) {
    %c0_i32 = arith.constant 0 : i32
    %c0_i32_0 = arith.constant 0 : i32
    return %c0_i32, %arg0 : i32, i32
  }
  func.func @transform_3(%arg0: i32, %arg1: i32, %arg2: i32) -> (i32, i32) {
    %c0_i32 = arith.constant 0 : i32
    return %arg1, %arg0 : i32, i32
  }
}

</mosaic_0001>

<llo_original>
// kernel: tpu_custom_call.1
$region0: #{tpu_custom_call.1}
  #allocation0 [shape = 'u32[]', space=smem, size = 0x4, offset = 0x4, fixed_abs, tag = 'smem constant byte address 0x4 - core index']
  #allocation1 [shape = 'u32[144,128]{1,0:T(1,128)}', space=vmem, size = 0x12000, scoped, tag = 'internal scratch']
  %s0 = inlined_call_operand.vmem [shape: f32[16,32], index: 0, kind: input, shape index: {}]
  %s1 = inlined_call_operand.vmem [shape: f32[64,32], index: 1, kind: input, shape index: {}]
  %s2 = inlined_call_operand.vmem [shape: f32[1,64], index: 2, kind: input, shape index: {}]
  %s3 = inlined_call_operand.hbm [shape: f32[16,64], index: 3, kind: output, shape index: {}]
  %s4 = sld [smem:[#allocation0]]
  $region22: #{tpu_custom_call.1} parent=0
    _
  %s6 = ssub.s32 1, %s4
  %s7 = scalar_select 0, %s6, %s4
  $region1: #{tpu_custom_call.1} parent=0
    #allocation2 [shape = 'u8[8192]{0}', space=vmem, size = 0x2000, scoped, tag = 'output window, operand 0, single buffered']
    #allocation3 [shape = 's32[1]{0}', space=sflag, size = 0x4, scoped, tag = 'scoped memory for tpu_custom_call.1']
    %8 = vsyncpa [#allocation3], 0
    // Predicated region
    $region2: #{tpu_custom_call.1} parent=1 // pred_check
      _
    $region3: #{tpu_custom_call.1} parent=1 // pred_check_branch
      %10 = sbr.rel (0) target = $region5
    $region4: #{tpu_custom_call.1} parent=1 // pred_region
      _
    $region5: #{tpu_custom_call.1} parent=1 // pred_fallthru
      _
    // Predicated region
    $region6: #{tpu_custom_call.1} parent=1 // pred_check
      _
    $region7: #{tpu_custom_call.1} parent=1 // pred_check_branch
      %12 = sbr.rel (0) target = $region9
    $region8: #{tpu_custom_call.1} parent=1 // pred_region
      _
    $region9: #{tpu_custom_call.1} parent=1 // pred_fallthru
      _
    // Predicated region
    $region10: #{tpu_custom_call.1} parent=1 // pred_check
      _
    $region11: #{tpu_custom_call.1} parent=1 // pred_check_branch
      %14 = sbr.rel (0) target = $region13
    $region12: #{tpu_custom_call.1} parent=1 // pred_region
      _
    $region13: #{tpu_custom_call.1} parent=1 // pred_fallthru
      _
    %v15 = vld [vmem:[%s0] sm:$0xff]
    %v16 = vld [vmem:[%s0 + $0x8] sm:$0xff]
    %v17 = vld [vmem:[%s1] sm:$0xff]
    %v18 = vld [vmem:[%s1 + $0x8] sm:$0xff]
    %v19 = vld [vmem:[%s1 + $0x10] sm:$0xff]
    %v20 = vld [vmem:[%s1 + $0x18] sm:$0xff]
    %v21 = vld [vmem:[%s1 + $0x20] sm:$0xff]
    %v22 = vld [vmem:[%s1 + $0x28] sm:$0xff]
    %v23 = vld [vmem:[%s1 + $0x30] sm:$0xff]
    %v24 = vld [vmem:[%s1 + $0x38] sm:$0xff]
    %v25 = vld [vmem:[%s2] sm:$0x1]
    %v27 = vlaneseq
    %v28 = vshrl.u32 %v27, 7
    %v29 = vsub.s32 0, %v28
    %v30 = vrot.slane %v25, %v29
    %vm32 = vcmask 261120
    %v34 = vsel %vm32, %v15, 0
    %v37 = vsel %vm32, %v16, 0
    %v40 = vsel %vm32, %v17, 0
    %v43 = vsel %vm32, %v18, 0
    %v46 = vsel %vm32, %v19, 0
    %v49 = vsel %vm32, %v20, 0
    %v52 = vsel %vm32, %v21, 0
    %v55 = vsel %vm32, %v22, 0
    %v58 = vsel %vm32, %v23, 0
    %v61 = vsel %vm32, %v24, 0
    %63 = vmatprep.subr.mxu0 0.0
    %64 = vmatpush1.xpose.msra.mxu0 0.0
    %65 = vmatprep.subr.mxu0 0.0
    %66 = vmatpush1.xpose.msra.mxu0 0.0
    %67 = vmatprep.subr.mxu0 0.0
    %68 = vmatpush1.xpose.msra.mxu0 0.0
    %69 = vmatprep.subr.mxu0 0.0
    %70 = vmatpush1.xpose.msra.mxu0 0.0
    %71 = vmatprep.subr.mxu0 0.0
    %72 = vmatpush1.xpose.msra.mxu0 0.0
    %73 = vmatprep.subr.mxu0 0.0
    %74 = vmatpush1.xpose.msra.mxu0 0.0
    %75 = vmatprep.subr.mxu0 0.0
    %76 = vmatpush1.xpose.msra.mxu0 0.0
    %77 = vmatprep.subr.mxu0 0.0
    %78 = vmatpush1.xpose.msra.mxu0 0.0
    %79 = vmatprep.subr.mxu0 0.0
    %80 = vmatpush1.xpose.msra.mxu0 %v61
    %81 = vmatprep.subr.mxu0 0.0
    %82 = vmatpush1.xpose.msra.mxu0 %v58
    %83 = vmatprep.subr.mxu0 0.0
    %84 = vmatpush1.xpose.msra.mxu0 %v55
    %85 = vmatprep.subr.mxu0 0.0
    %86 = vmatpush1.xpose.msra.mxu0 %v52
    %87 = vmatprep.subr.mxu0 0.0
    %88 = vmatpush1.xpose.msra.mxu0 %v49
    %89 = vmatprep.subr.mxu0 0.0
    %90 = vmatpush1.xpose.msra.mxu0 %v46
    %91 = vmatprep.subr.mxu0 0.0
    %92 = vmatpush1.xpose.msra.mxu0 %v43
    %93 = vmatprep.subr.mxu0 0.0
    %94 = vmatpush1.xpose.msra.mxu0 %v40
    %95 = vmatprep.subr.mxu0 0.0
    %96 = vmatpush2.xpose.msra.mxu0 0.0
    %97 = vmatprep.subr.mxu0 0.0
    %98 = vmatpush2.xpose.msra.mxu0 0.0
    %99 = vmatprep.subr.mxu0 0.0
    %100 = vmatpush2.xpose.msra.mxu0 0.0
    %101 = vmatprep.subr.mxu0 0.0
    %102 = vmatpush2.xpose.msra.mxu0 0.0
    %103 = vmatprep.subr.mxu0 0.0
    %104 = vmatpush2.xpose.msra.mxu0 0.0
    %105 = vmatprep.subr.mxu0 0.0
    %106 = vmatpush2.xpose.msra.mxu0 0.0
    %107 = vmatprep.subr.mxu0 0.0
    %108 = vmatpush2.xpose.msra.mxu0 0.0
    %109 = vmatprep.subr.mxu0 0.0
    %110 = vmatpush2.xpose.msra.mxu0 0.0
    %111 = vmatprep.subr.mxu0 0.0
    %112 = vmatpush2.xpose.msra.mxu0 0.0
    %113 = vmatprep.subr.mxu0 0.0
    %114 = vmatpush2.xpose.msra.mxu0 0.0
    %115 = vmatprep.subr.mxu0 0.0
    %116 = vmatpush2.xpose.msra.mxu0 0.0
    %117 = vmatprep.subr.mxu0 0.0
    %118 = vmatpush2.xpose.msra.mxu0 0.0
    %119 = vmatprep.subr.mxu0 0.0
    %120 = vmatpush2.xpose.msra.mxu0 0.0
    %121 = vmatprep.subr.mxu0 0.0
    %122 = vmatpush2.xpose.msra.mxu0 0.0
    %123 = vmatprep.subr.mxu0 0.0
    %124 = vmatpush2.xpose.msra.mxu0 0.0
    %125 = vmatprep.subr.mxu0 0.0
    %126 = vmatpush2.xpose.msra.mxu0 0.0
    %127 = vmatprep.mubr.f32.mxu0 0.0
    %128 = vmatmul.mubr.f32.gmra.mxu0 %v34
    %v129 = vpop.f32.mrf.mxu0
    %v130 = vadd.f32 %v30, %v129
    %v131 = vpop.f32.mrf.mxu0
    %132 = vmatprep.mubr.f32.mxu0 0.0
    %133 = vmatmul.mubr.f32.gmra.mxu0 %v37
    %v134 = vpop.f32.mrf.mxu0
    %v135 = vadd.f32 %v30, %v134
    %v136 = vpop.f32.mrf.mxu0
    %137 = vdwg.mxu0
    %vm138 = vcmask 523264
    %139 = vst.msk [vmem:[#allocation2] sm:$0xff] %vm138, %v130
    %140 = vst.msk [vmem:[#allocation2 + $0x8] sm:$0xff] %vm138, %v135
    // Predicated region
    $region14: #{tpu_custom_call.1} parent=1 // pred_check
      _
    $region15: #{tpu_custom_call.1} parent=1 // pred_check_branch
      %142 = sbr.rel (0) target = $region17
    $region16: #{tpu_custom_call.1} parent=1 // pred_region
      %s144 = ssub.s32 256, 256
      %145 = vsyncadd [#allocation3], %s144
      %s146 = sshll.u32 [#allocation2], 4
      %s147 = int_to_ptr.vmem [resolvable:$true] %s146
      %152 = dma.vmem_to_hbm [thread:$0]  %s147, 256, %s3, [#allocation3], 128, 128, 8
    $region17: #{tpu_custom_call.1} parent=1 // pred_fallthru
      _
    // Predicated region
    $region18: #{tpu_custom_call.1} parent=1 // pred_check
      _
    $region19: #{tpu_custom_call.1} parent=1 // pred_check_branch
      %154 = sbr.rel (0) target = $region21
    $region20: #{tpu_custom_call.1} parent=1 // pred_region
      %155 = dma.done [#allocation3], 256
    $region21: #{tpu_custom_call.1} parent=1 // pred_fallthru
      _
    %156 = vsyncpa [#allocation3], 1

</llo_original>
